<compile_context>
chip_gen: v5e
topology: v5e:2x2
jax: 0.10.0
libtpu: 0.0.40
codegen_flags: <defaults>
</compile_context>

<pallas_src>
import functools

import jax
import jax.numpy as jnp
from jax import lax
from jax.experimental import pallas as pl
from jax.experimental.pallas import tpu as pltpu


_INV_SQRT2 = 0.7071067811865476


def _ffn_kernel(x_ref, w1_ref, b1_ref, w2_ref, b2_ref, o_ref, acc_ref):
    """One (row-tile, hidden-chunk) step of: gelu(x @ W1 + b1) @ W2 + b2."""
    k = pl.program_id(1)

    @pl.when(k == 0)
    def _():
        acc_ref[...] = jnp.zeros_like(acc_ref)

    # First matmul for this hidden chunk: (tm, dim_p) @ (dim_p, tk) on the MXU
    # with bf16 inputs and f32 accumulation.
    h = jnp.dot(x_ref[...], w1_ref[...], preferred_element_type=jnp.float32)
    h = h + b1_ref[...]                                   # (1, tk) f32 bias broadcast

    # Exact (erf-based) GELU in f32 — matches torch.nn.GELU() default.
    h = 0.5 * h * (1.0 + lax.erf(h * jnp.float32(_INV_SQRT2)))

    # TODO(synk): dropout with p>0 would need pltpu.prng_seed/prng_random_bits
    # masking inside the kernel; p=0.0 here -> identity.

    # Second matmul: accumulate this hidden chunk's contribution into the
    # resident f32 accumulator. h is downcast to bf16 for the MXU.
    acc_ref[...] += jnp.dot(h.astype(w2_ref.dtype), w2_ref[...],
                            preferred_element_type=jnp.float32)

    @pl.when(k == pl.num_programs(1) - 1)
    def _():
        o_ref[...] = (acc_ref[...] + b2_ref[...]).astype(o_ref.dtype)


def _round_up(x, m):
    return (x + m - 1) // m * m


@functools.partial(jax.jit, static_argnames=("tile_m", "tile_k"))
def feed_forward(x, w1, b1, w2, b2, *, tile_m=256, tile_k=512):
    """x: [B, S, dim] -> [B, S, dim].  w1: [dim, hidden], w2: [hidden, dim]."""
    B, S, dim = x.shape
    hidden = w1.shape[1]
    M = B * S

    # ---- static tiling / padding choices (lane-dense feature dims) ----
    dim_p = _round_up(dim, 128)
    hid_p = _round_up(hidden, 128)
    tm = min(tile_m, _round_up(M, 8))          # row tile, multiple of 8
    # largest multiple of 128 that is <= tile_k and divides the padded hidden dim
    tk = 128
    for cand in range(128, min(tile_k, hid_p) + 1, 128):
        if hid_p % cand == 0:
            tk = cand
    M_p = _round_up(M, tm)

    compute_dtype = jnp.bfloat16
    out_dtype = x.dtype

    # ---- zero-padded operands (padding contributes exactly 0 to real outputs) ----
    x2d = x.reshape(M, dim).astype(compute_dtype)
    x_p = jnp.zeros((M_p, dim_p), compute_dtype).at[:M, :dim].set(x2d)
    w1_p = jnp.zeros((dim_p, hid_p), compute_dtype).at[:dim, :hidden].set(
        w1.astype(compute_dtype))
    b1_p = jnp.zeros((1, hid_p), jnp.float32).at[0, :hidden].set(
        b1.astype(jnp.float32))
    w2_p = jnp.zeros((hid_p, dim_p), compute_dtype).at[:hidden, :dim].set(
        w2.astype(compute_dtype))
    b2_p = jnp.zeros((1, dim_p), jnp.float32).at[0, :dim].set(
        b2.astype(jnp.float32))

    grid = (M_p // tm, hid_p // tk)   # (row tiles: parallel, hidden chunks: arbitrary)

    # ---- VMEM budget: double-buffered tiles + resident f32 accumulator ----
    out_bytes = jnp.dtype(out_dtype).itemsize
    vmem_needed = (
        2 * tm * dim_p * 2          # x tile (bf16), double buffered
        + 2 * dim_p * tk * 2        # W1 chunk (bf16)
        + 2 * tk * 4                # b1 chunk (f32)
        + 2 * tk * dim_p * 2        # W2 chunk (bf16)
        + 2 * dim_p * 4             # b2 (f32)
        + 2 * tm * dim_p * out_bytes  # output tile
        + tm * dim_p * 4            # accumulator scratch (f32)
    )
    vmem_limit = min(max(int(vmem_needed * 1.5) + (4 << 20), 32 << 20), 64 << 20)

    cost = pl.CostEstimate(
        flops=4 * M_p * dim_p * hid_p,            # two matmuls
        transcendentals=M_p * hid_p,              # erf in the GELU
        bytes_accessed=(x_p.size * 2 + w1_p.size * 2 + w2_p.size * 2
                        + b1_p.size * 4 + b2_p.size * 4
                        + M_p * dim_p * out_bytes),
    )

    out = pl.pallas_call(
        _ffn_kernel,
        out_shape=jax.ShapeDtypeStruct((M_p, dim_p), out_dtype),
        grid_spec=pltpu.PrefetchScalarGridSpec(
            num_scalar_prefetch=0,
            grid=grid,
            in_specs=[
                pl.BlockSpec((tm, dim_p), lambda i, k: (i, 0)),   # x row tile
                pl.BlockSpec((dim_p, tk), lambda i, k: (0, k)),   # W1 hidden chunk
                pl.BlockSpec((1, tk), lambda i, k: (0, k)),       # b1 hidden chunk
                pl.BlockSpec((tk, dim_p), lambda i, k: (k, 0)),   # W2 hidden chunk
                pl.BlockSpec((1, dim_p), lambda i, k: (0, 0)),    # b2
            ],
            out_specs=pl.BlockSpec((tm, dim_p), lambda i, k: (i, 0)),
            scratch_shapes=[pltpu.VMEM((tm, dim_p), jnp.float32)],
        ),
        compiler_params=pltpu.CompilerParams(
            dimension_semantics=("parallel", "arbitrary"),
            vmem_limit_bytes=vmem_limit,
        ),
        cost_estimate=cost,
    )(x_p, w1_p, b1_p, w2_p, b2_p)

    return out[:M, :dim].reshape(B, S, dim)


def _torch_linear_init(key, fan_in, fan_out, dtype=jnp.float32):
    """Deterministic init mimicking nn.Linear's U(-1/sqrt(fan_in), 1/sqrt(fan_in))."""
    kw, kb = jax.random.split(key)
    bound = 1.0 / jnp.sqrt(fan_in)
    # Stored as [in, out] so the kernel can do x @ W directly (torch stores [out, in]).
    w = jax.random.uniform(kw, (fan_in, fan_out), dtype, -bound, bound)
    b = jax.random.uniform(kb, (fan_out,), dtype, -bound, bound)
    return w, b


def _reference(x, w1, b1, w2, b2):
    h = x @ w1 + b1
    h = 0.5 * h * (1.0 + lax.erf(h / jnp.sqrt(2.0)))
    return h @ w2 + b2


if __name__ == "__main__":
    key = jax.random.PRNGKey(0)
    k_x, k_l1, k_l2 = jax.random.split(key, 3)

    B, S, dim, hidden = 2, 8, 32, 64

    x = jax.random.normal(k_x, (B, S, dim), jnp.float32)
    w1, b1 = _torch_linear_init(k_l1, dim, hidden)
    w2, b2 = _torch_linear_init(k_l2, hidden, dim)

    y = feed_forward(x, w1, b1, w2, b2)
    y = jax.block_until_ready(y)

    y_ref = _reference(x, w1, b1, w2, b2)
    assert y.shape == (B, S, dim)
    # bf16 MXU inputs with f32 accumulation -> slightly looser tolerance vs f32 ref.
    assert jnp.allclose(y, y_ref, atol=3e-2, rtol=3e-2), "mismatch vs reference"

    print("KERNEL_OK")
</pallas_src>

<mosaic_0001>
module attributes {stable_mosaic.version = 11 : i64} {
  func.func @_ffn_kernel(%arg0: i32, %arg1: i32, %arg2: memref<16x128xbf16, #tpu.memory_space<vmem>>, %arg3: memref<128x128xbf16, #tpu.memory_space<vmem>>, %arg4: memref<1x128xf32, #tpu.memory_space<vmem>>, %arg5: memref<128x128xbf16, #tpu.memory_space<vmem>>, %arg6: memref<1x128xf32, #tpu.memory_space<vmem>>, %arg7: memref<16x128xf32, #tpu.memory_space<vmem>>, %arg8: memref<16x128xf32, #tpu.memory_space<vmem>>) attributes {dimension_semantics = [#tpu.dimension_semantics<parallel>, #tpu.dimension_semantics<arbitrary>], iteration_bounds = array<i64: 1, 1>, scalar_prefetch = 0 : i64, scratch_operands = 1 : i64, tpu.core_type = #tpu.core_type<tc>, window_params = [{transform_indices = @transform_0, window_bounds = array<i64: 16, 128>}, {transform_indices = @transform_1, window_bounds = array<i64: 128, 128>}, {transform_indices = @transform_2, window_bounds = array<i64: 1, 128>}, {transform_indices = @transform_3, window_bounds = array<i64: 128, 128>}, {pipeline_mode = #tpu.pipeline_mode<synchronous>, transform_indices = @transform_4, window_bounds = array<i64: 1, 128>}, {transform_indices = @transform_5, window_bounds = array<i64: 16, 128>}]} {
    %c0_i32 = arith.constant 0 : i32
    %0 = arith.cmpi eq, %arg1, %c0_i32 : i32
    %1 = arith.extui %0 : i1 to i32
    %c0_i32_0 = arith.constant 0 : i32
    %2 = arith.cmpi ne, %1, %c0_i32_0 : i32
    scf.if %2 {
      %cst_18 = arith.constant 0.000000e+00 : f32
      %26 = vector.broadcast %cst_18 : f32 to vector<16x128xf32>
      %c0_19 = arith.constant 0 : index
      %c0_20 = arith.constant 0 : index
      %27 = vector.load %arg8[%c0_19, %c0_20] : memref<16x128xf32, #tpu.memory_space<vmem>>, vector<16x128xf32>
      tpu.vector_store %arg8[%c0_19, %c0_20], %26 {strides = array<i32>} : memref<16x128xf32, #tpu.memory_space<vmem>>, vector<16x128xf32>,
    } else {
    }
    %c0 = arith.constant 0 : index
    %c0_1 = arith.constant 0 : index
    %3 = vector.load %arg2[%c0, %c0_1] : memref<16x128xbf16, #tpu.memory_space<vmem>>, vector<16x128xbf16>
    %c0_2 = arith.constant 0 : index
    %c0_3 = arith.constant 0 : index
    %4 = vector.load %arg3[%c0_2, %c0_3] : memref<128x128xbf16, #tpu.memory_space<vmem>>, vector<128x128xbf16>
    %cst = arith.constant dense<0.000000e+00> : vector<16x128xf32>
    %5 = tpu.matmul %3, %4, %cst {dimension_numbers = #tpu.dot_dimension_numbers<[1], [0], [0], [1], [0, 0, 1, 1], [], []>} : vector<16x128xbf16>, vector<128x128xbf16>, vector<16x128xf32> -> vector<16x128xf32>
    %c0_4 = arith.constant 0 : index
    %c0_5 = arith.constant 0 : index
    %6 = vector.load %arg4[%c0_4, %c0_5] : memref<1x128xf32, #tpu.memory_space<vmem>>, vector<1x128xf32>
    %7 = vector.broadcast %6 : vector<1x128xf32> to vector<16x128xf32>
    %8 = arith.addf %5, %7 : vector<16x128xf32>
    %cst_6 = arith.constant 5.000000e-01 : f32
    %9 = vector.broadcast %cst_6 : f32 to vector<16x128xf32>
    %10 = arith.mulf %9, %8 : vector<16x128xf32>
    %cst_7 = arith.constant 0.707106769 : f32
    %11 = vector.broadcast %cst_7 : f32 to vector<16x128xf32>
    %12 = arith.mulf %8, %11 : vector<16x128xf32>
    %13 = math.erf %12 : vector<16x128xf32>
    %cst_8 = arith.constant 1.000000e+00 : f32
    %14 = vector.broadcast %cst_8 : f32 to vector<16x128xf32>
    %15 = arith.addf %14, %13 : vector<16x128xf32>
    %16 = arith.mulf %10, %15 : vector<16x128xf32>
    %c0_9 = arith.constant 0 : index
    %c0_10 = arith.constant 0 : index
    %17 = vector.load %arg8[%c0_9, %c0_10] : memref<16x128xf32, #tpu.memory_space<vmem>>, vector<16x128xf32>
    %18 = arith.truncf %16 : vector<16x128xf32> to vector<16x128xbf16>
    %c0_11 = arith.constant 0 : index
    %c0_12 = arith.constant 0 : index
    %19 = vector.load %arg5[%c0_11, %c0_12] : memref<128x128xbf16, #tpu.memory_space<vmem>>, vector<128x128xbf16>
    %cst_13 = arith.constant dense<0.000000e+00> : vector<16x128xf32>
    %20 = tpu.matmul %18, %19, %cst_13 {dimension_numbers = #tpu.dot_dimension_numbers<[1], [0], [0], [1], [0, 0, 1, 1], [], []>} : vector<16x128xbf16>, vector<128x128xbf16>, vector<16x128xf32> -> vector<16x128xf32>
    %21 = arith.addf %17, %20 : vector<16x128xf32>
    %c0_14 = arith.constant 0 : index
    %c0_15 = arith.constant 0 : index
    %22 = vector.load %arg8[%c0_14, %c0_15] : memref<16x128xf32, #tpu.memory_space<vmem>>, vector<16x128xf32>
    tpu.vector_store %arg8[%c0_14, %c0_15], %21 {strides = array<i32>} : memref<16x128xf32, #tpu.memory_space<vmem>>, vector<16x128xf32>,
    %c0_i32_16 = arith.constant 0 : i32
    %23 = arith.cmpi eq, %arg1, %c0_i32_16 : i32
    %24 = arith.extui %23 : i1 to i32
    %c0_i32_17 = arith.constant 0 : i32
    %25 = arith.cmpi ne, %24, %c0_i32_17 : i32
    scf.if %25 {
      %c0_18 = arith.constant 0 : index
      %c0_19 = arith.constant 0 : index
      %26 = vector.load %arg8[%c0_18, %c0_19] : memref<16x128xf32, #tpu.memory_space<vmem>>, vector<16x128xf32>
      %c0_20 = arith.constant 0 : index
      %c0_21 = arith.constant 0 : index
      %27 = vector.load %arg6[%c0_20, %c0_21] : memref<1x128xf32, #tpu.memory_space<vmem>>, vector<1x128xf32>
      %28 = vector.broadcast %27 : vector<1x128xf32> to vector<16x128xf32>
      %29 = arith.addf %26, %28 : vector<16x128xf32>
      %c0_22 = arith.constant 0 : index
      %c0_23 = arith.constant 0 : index
      %30 = vector.load %arg7[%c0_22, %c0_23] : memref<16x128xf32, #tpu.memory_space<vmem>>, vector<16x128xf32>
      tpu.vector_store %arg7[%c0_22, %c0_23], %29 {strides = array<i32>} : memref<16x128xf32, #tpu.memory_space<vmem>>, vector<16x128xf32>,
    } else {
    }
    return
  }
  func.func @transform_0(%arg0: i32, %arg1: i32) -> (i32, i32) {
    %c0_i32 = arith.constant 0 : i32
    %c0_i32_0 = arith.constant 0 : i32
    return %arg0, %c0_i32 : i32, i32
  }
  func.func @transform_1(%arg0: i32, %arg1: i32) -> (i32, i32) {
    %c0_i32 = arith.constant 0 : i32
    %c0_i32_0 = arith.constant 0 : i32
    return %c0_i32, %arg1 : i32, i32
  }
  func.func @transform_2(%arg0: i32, %arg1: i32) -> (i32, i32) {
    %c0_i32 = arith.constant 0 : i32
    %c0_i32_0 = arith.constant 0 : i32
    return %c0_i32, %arg1 : i32, i32
  }
  func.func @transform_3(%arg0: i32, %arg1: i32) -> (i32, i32) {
    %c0_i32 = arith.constant 0 : i32
    %c0_i32_0 = arith.constant 0 : i32
    return %arg1, %c0_i32 : i32, i32
  }
  func.func @transform_4(%arg0: i32, %arg1: i32) -> (i32, i32) {
    %c0_i32 = arith.constant 0 : i32
    %c0_i32_0 = arith.constant 0 : i32
    %c0_i32_1 = arith.constant 0 : i32
    return %c0_i32, %c0_i32_0 : i32, i32
  }
  func.func @transform_5(%arg0: i32, %arg1: i32) -> (i32, i32) {
    %c0_i32 = arith.constant 0 : i32
    %c0_i32_0 = arith.constant 0 : i32
    return %arg0, %c0_i32 : i32, i32
  }
}

</mosaic_0001>

<llo_original>
// kernel: feed_forward.1
$region0: #{feed_forward.1}
  #allocation0 [shape = 'u32[]', space=smem, size = 0x4, offset = 0x4, fixed_abs, tag = 'smem constant byte address 0x4 - core index']
  #allocation1 [shape = 'u32[72,128]{1,0:T(1,128)}', space=vmem, size = 0x9000, scoped, tag = 'internal scratch']
  #allocation2 [shape = 'f32[16,128]{1,0:T(8,128)}', space=vmem, size = 0x2000, scoped, tag = 'scratch operand']
  %s0 = inlined_call_operand.vmem [shape: bf16[16,128], index: 0, kind: input, shape index: {}]
  %s1 = inlined_call_operand.vmem [shape: bf16[128,128], index: 1, kind: input, shape index: {}]
  %s2 = inlined_call_operand.vmem [shape: f32[1,128], index: 2, kind: input, shape index: {}]
  %s3 = inlined_call_operand.vmem [shape: bf16[128,128], index: 3, kind: input, shape index: {}]
  %s4 = inlined_call_operand.vmem [shape: f32[1,128], index: 4, kind: input, shape index: {}]
  %s5 = inlined_call_operand.vmem [shape: f32[16,128], index: 5, kind: output, shape index: {}]
  %s6 = sld [smem:[#allocation0]]
  $region38: #{feed_forward.1} parent=0
    _
  %s8 = ssub.s32 1, %s6
  %s9 = scalar_select 0, %s8, %s6
  // Predicated region
  $region2: #{feed_forward.1} parent=0 // pred_check
    _
  $region3: #{feed_forward.1} parent=0 // pred_check_branch
    %11 = sbr.rel (0) target = $region5
  $region4: #{feed_forward.1} parent=0 // pred_region
    _
  $region5: #{feed_forward.1} parent=0 // pred_fallthru
    _
  // Predicated region
  $region6: #{feed_forward.1} parent=0 // pred_check
    _
  $region7: #{feed_forward.1} parent=0 // pred_check_branch
    %13 = sbr.rel (0) target = $region9
  $region8: #{feed_forward.1} parent=0 // pred_region
    _
  $region9: #{feed_forward.1} parent=0 // pred_fallthru
    _
  // Predicated region
  $region10: #{feed_forward.1} parent=0 // pred_check
    _
  $region11: #{feed_forward.1} parent=0 // pred_check_branch
    %15 = sbr.rel (0) target = $region13
  $region12: #{feed_forward.1} parent=0 // pred_region
    _
  $region13: #{feed_forward.1} parent=0 // pred_fallthru
    _
  // Predicated region
  $region14: #{feed_forward.1} parent=0 // pred_check
    _
  $region15: #{feed_forward.1} parent=0 // pred_check_branch
    %17 = sbr.rel (0) target = $region17
  $region16: #{feed_forward.1} parent=0 // pred_region
    _
  $region17: #{feed_forward.1} parent=0 // pred_fallthru
    _
  // Predicated region
  $region18: #{feed_forward.1} parent=0 // pred_check
    _
  $region19: #{feed_forward.1} parent=0 // pred_check_branch
    %19 = sbr.rel (0) target = $region21
  $region20: #{feed_forward.1} parent=0 // pred_region
    _
  $region21: #{feed_forward.1} parent=0 // pred_fallthru
    _
  %p20 = scmp.eq.s32.totalorder 0, 0
  // Predicated region
  $region22: #{feed_forward.1} parent=0 // pred_check
    %p21 = pneg %p20
  $region23: #{feed_forward.1} parent=0 // pred_check_branch
    %23 = sbr.rel (%p21) target = $region25
  $region24: #{feed_forward.1} parent=0 // pred_region
    %24 = vst [vmem:[#allocation2] sm:$0xff] 0.0
    %25 = vst [vmem:[#allocation2 + $0x8] sm:$0xff] 0.0
  $region25: #{feed_forward.1} parent=0 // pred_fallthru
    _
  %v26 = vld [vmem:[%s0] sm:$0xf]
  %v27 = vld [vmem:[%s0 + $0x4] sm:$0xf]
  %v28 = vld [vmem:[%s1] sm:$0xf]
  %v29 = vld [vmem:[%s1 + $0x4] sm:$0xf]
  %v30 = vld [vmem:[%s1 + $0x8] sm:$0xf]
  %v31 = vld [vmem:[%s1 + $0xc] sm:$0xf]
  %v32 = vld [vmem:[%s1 + $0x10] sm:$0xf]
  %v33 = vld [vmem:[%s1 + $0x14] sm:$0xf]
  %v34 = vld [vmem:[%s1 + $0x18] sm:$0xf]
  %v35 = vld [vmem:[%s1 + $0x1c] sm:$0xf]
  %v36 = vld [vmem:[%s1 + $0x20] sm:$0xf]
  %v37 = vld [vmem:[%s1 + $0x24] sm:$0xf]
  %v38 = vld [vmem:[%s1 + $0x28] sm:$0xf]
  %v39 = vld [vmem:[%s1 + $0x2c] sm:$0xf]
  %v40 = vld [vmem:[%s1 + $0x30] sm:$0xf]
  %v41 = vld [vmem:[%s1 + $0x34] sm:$0xf]
  %v42 = vld [vmem:[%s1 + $0x38] sm:$0xf]
  %v43 = vld [vmem:[%s1 + $0x3c] sm:$0xf]
  %v44 = vld [vmem:[%s2] sm:$0x1]
  %v46 = vperm.slane %v44, 0
  %v50 = vunpack.c.l.b16 %v26
  %v51 = vunpack.c.l.b16 %v27
  %v52 = vpack.c.b16 %v51, %v50
  %v70 = vunpack.c.l.b16 %v28
  %v71 = vunpack.c.l.b16 %v29
  %v72 = vunpack.c.l.b16 %v30
  %v73 = vunpack.c.l.b16 %v31
  %v74 = vunpack.c.l.b16 %v32
  %v75 = vunpack.c.l.b16 %v33
  %v76 = vunpack.c.l.b16 %v34
  %v77 = vunpack.c.l.b16 %v35
  %v78 = vunpack.c.l.b16 %v36
  %v79 = vunpack.c.l.b16 %v37
  %v80 = vunpack.c.l.b16 %v38
  %v81 = vunpack.c.l.b16 %v39
  %v82 = vunpack.c.l.b16 %v40
  %v83 = vunpack.c.l.b16 %v41
  %v84 = vunpack.c.l.b16 %v42
  %v85 = vunpack.c.l.b16 %v43
  %v86 = vpack.c.b16 %v71, %v70
  %v87 = vpack.c.b16 %v73, %v72
  %v88 = vpack.c.b16 %v75, %v74
  %v89 = vpack.c.b16 %v77, %v76
  %v90 = vpack.c.b16 %v79, %v78
  %v91 = vpack.c.b16 %v81, %v80
  %v92 = vpack.c.b16 %v83, %v82
  %v93 = vpack.c.b16 %v85, %v84
  %102 = vmatpush.bf16.msra.mxu0 %v93
  %103 = vmatpush.bf16.msra.mxu0 %v92
  %104 = vmatpush.bf16.msra.mxu0 %v91
  %105 = vmatpush.bf16.msra.mxu0 %v90
  %106 = vmatpush.bf16.msra.mxu0 %v89
  %107 = vmatpush.bf16.msra.mxu0 %v88
  %108 = vmatpush.bf16.msra.mxu0 %v87
  %109 = vmatpush.bf16.msra.mxu0 %v86
  %110 = vmatmul.bf16.gmra.mxu0 %v52
  %v111 = vpop.f32.mrf.mxu0
  %v112 = vadd.f32 %v46, %v111
  %v113 = vpop.f32.mrf.mxu0
  %v114 = vadd.f32 %v46, %v113
  %115 = vdwg.mxu0
  %v116 = vmul.f32 %v112, 0.5
  %v117 = vmul.f32 %v114, 0.5
  %v118 = vmul.f32 %v112, 0.70710677
  %v119 = vmul.f32 %v114, 0.70710677
  %v120 = vmul.f32 %v118, %v118
  %v121 = vmin.f32 16.0, %v120
  %v122 = vmul.f32 %v121, 2.1237322e-06
  %v123 = vadd.f32 %v122, 0.00028619796
  %v124 = vmul.f32 %v121, %v123
  %v125 = vadd.f32 %v124, 0.0036580483
  %v126 = vmul.f32 %v121, %v125
  %v127 = vadd.f32 %v126, 0.05243302
  %v128 = vmul.f32 %v121, %v127
  %v129 = vadd.f32 %v128, 0.18741608
  %v130 = vmul.f32 %v121, %v129
  %v131 = vadd.f32 %v130, 1.1283791
  %v132 = vmul.f32 %v118, %v131
  %v133 = vmul.f32 %v121, 3.8918573e-05
  %v134 = vadd.f32 %v133, 0.001143296
  %v135 = vmul.f32 %v121, %v134
  %v136 = vadd.f32 %v135, 0.014752088
  %v137 = vmul.f32 %v121, %v136
  %v138 = vadd.f32 %v137, 0.112945676
  %v139 = vmul.f32 %v121, %v138
  %v140 = vadd.f32 %v139, 0.4994258
  %v141 = vmul.f32 %v121, %v140
  %v142 = vadd.f32 %v141, 1.0
  %v143 = vrcp.pop %v142
  %v144 = vmul.f32 %v142, %v143
  %v145 = vsub.f32 1.0, %v144
  %v146 = vmul.f32 %v143, %v145
  %v147 = vadd.f32 %v143, %v146
  %vm148 = vweird.f32 %v142
  %vm149 = vweird.f32 %v143
  %vm150 = vmor %vm148, %vm149
  %v151 = vsel %vm150, %v143, %v147
  %v152 = vand.u32 2147483647, %v142
  %vm153 = vcmp.eq.f32.partialorder %v152, 8.507059e+37
  %v154 = vand.u32 %v142, 2147483648
  %v155 = vor.u32 1.1754944e-38, %v154
  %v156 = vsel %vm153, %v155, %v151
  %v157 = vmul.f32 %v132, %v156
  %v158 = vmin.f32 %v157, 1.0
  %v159 = vmax.f32 %v158, -1.0
  %v160 = vmul.f32 %v119, %v119
  %v161 = vmin.f32 16.0, %v160
  %v162 = vmul.f32 %v161, 2.1237322e-06
  %v163 = vadd.f32 %v162, 0.00028619796
  %v164 = vmul.f32 %v161, %v163
  %v165 = vadd.f32 %v164, 0.0036580483
  %v166 = vmul.f32 %v161, %v165
  %v167 = vadd.f32 %v166, 0.05243302
  %v168 = vmul.f32 %v161, %v167
  %v169 = vadd.f32 %v168, 0.18741608
  %v170 = vmul.f32 %v161, %v169
  %v171 = vadd.f32 %v170, 1.1283791
  %v172 = vmul.f32 %v119, %v171
  %v173 = vmul.f32 %v161, 3.8918573e-05
  %v174 = vadd.f32 %v173, 0.001143296
  %v175 = vmul.f32 %v161, %v174
  %v176 = vadd.f32 %v175, 0.014752088
  %v177 = vmul.f32 %v161, %v176
  %v178 = vadd.f32 %v177, 0.112945676
  %v179 = vmul.f32 %v161, %v178
  %v180 = vadd.f32 %v179, 0.4994258
  %v181 = vmul.f32 %v161, %v180
  %v182 = vadd.f32 %v181, 1.0
  %v183 = vrcp.pop %v182
  %v184 = vmul.f32 %v182, %v183
  %v185 = vsub.f32 1.0, %v184
  %v186 = vmul.f32 %v183, %v185
  %v187 = vadd.f32 %v183, %v186
  %vm188 = vweird.f32 %v182
  %vm189 = vweird.f32 %v183
  %vm190 = vmor %vm188, %vm189
  %v191 = vsel %vm190, %v183, %v187
  %v192 = vand.u32 2147483647, %v182
  %vm193 = vcmp.eq.f32.partialorder %v192, 8.507059e+37
  %v194 = vand.u32 %v182, 2147483648
  %v195 = vor.u32 1.1754944e-38, %v194
  %v196 = vsel %vm193, %v195, %v191
  %v197 = vmul.f32 %v172, %v196
  %v198 = vmin.f32 %v197, 1.0
  %v199 = vmax.f32 %v198, -1.0
  %v200 = vadd.f32 %v159, 1.0
  %v201 = vadd.f32 %v199, 1.0
  %v202 = vmul.f32 %v116, %v200
  %v203 = vmul.f32 %v117, %v201
  %v204 = vld [vmem:[#allocation2] sm:$0xff]
  %v205 = vld [vmem:[#allocation2 + $0x8] sm:$0xff]
  %v206 = vpack.c.bf16 %v203, %v202
  %v207 = vld [vmem:[%s3] sm:$0xf]
  %v208 = vld [vmem:[%s3 + $0x4] sm:$0xf]
  %v209 = vld [vmem:[%s3 + $0x8] sm:$0xf]
  %v210 = vld [vmem:[%s3 + $0xc] sm:$0xf]
  %v211 = vld [vmem:[%s3 + $0x10] sm:$0xf]
  %v212 = vld [vmem:[%s3 + $0x14] sm:$0xf]
  %v213 = vld [vmem:[%s3 + $0x18] sm:$0xf]
  %v214 = vld [vmem:[%s3 + $0x1c] sm:$0xf]
  %v215 = vld [vmem:[%s3 + $0x20] sm:$0xf]
  %v216 = vld [vmem:[%s3 + $0x24] sm:$0xf]
  %v217 = vld [vmem:[%s3 + $0x28] sm:$0xf]
  %v218 = vld [vmem:[%s3 + $0x2c] sm:$0xf]
  %v219 = vld [vmem:[%s3 + $0x30] sm:$0xf]
  %v220 = vld [vmem:[%s3 + $0x34] sm:$0xf]
  %v221 = vld [vmem:[%s3 + $0x38] sm:$0xf]
  %v222 = vld [vmem:[%s3 + $0x3c] sm:$0xf]
  %v239 = vunpack.c.l.b16 %v207
  %v240 = vunpack.c.l.b16 %v208
  %v241 = vunpack.c.l.b16 %v209
  %v242 = vunpack.c.l.b16 %v210
  %v243 = vunpack.c.l.b16 %v211
  %v244 = vunpack.c.l.b16 %v212
  %v245 = vunpack.c.l.b16 %v213
  %v246 = vunpack.c.l.b16 %v214
  %v247 = vunpack.c.l.b16 %v215
  %v248 = vunpack.c.l.b16 %v216
  %v249 = vunpack.c.l.b16 %v217
  %v250 = vunpack.c.l.b16 %v218
  %v251 = vunpack.c.l.b16 %v219
  %v252 = vunpack.c.l.b16 %v220
  %v253 = vunpack.c.l.b16 %v221
  %v254 = vunpack.c.l.b16 %v222
  %v255 = vpack.c.b16 %v240, %v239
  %v256 = vpack.c.b16 %v242, %v241
  %v257 = vpack.c.b16 %v244, %v243
  %v258 = vpack.c.b16 %v246, %v245
  %v259 = vpack.c.b16 %v248, %v247
  %v260 = vpack.c.b16 %v250, %v249
  %v261 = vpack.c.b16 %v252, %v251
  %v262 = vpack.c.b16 %v254, %v253
  %271 = vmatpush.bf16.msra.mxu0 %v262
  %272 = vmatpush.bf16.msra.mxu0 %v261
  %273 = vmatpush.bf16.msra.mxu0 %v260
  %274 = vmatpush.bf16.msra.mxu0 %v259
  %275 = vmatpush.bf16.msra.mxu0 %v258
  %276 = vmatpush.bf16.msra.mxu0 %v257
  %277 = vmatpush.bf16.msra.mxu0 %v256
  %278 = vmatpush.bf16.msra.mxu0 %v255
  %279 = vmatmul.bf16.gmra.mxu0 %v206
  %v280 = vpop.f32.mrf.mxu0
  %v281 = vadd.f32 0.0, %v280
  %v282 = vpop.f32.mrf.mxu0
  %v283 = vadd.f32 0.0, %v282
  %284 = vdwg.mxu0
  %v285 = vadd.f32 %v204, %v281
  %v286 = vadd.f32 %v205, %v283
  %287 = vst [vmem:[#allocation2] sm:$0xff] %v285
  %288 = vst [vmem:[#allocation2 + $0x8] sm:$0xff] %v286
  // Predicated region
  $region26: #{feed_forward.1} parent=0 // pred_check
    %p289 = pneg %p20
  $region27: #{feed_forward.1} parent=0 // pred_check_branch
    %291 = sbr.rel (%p289) target = $region29
  $region28: #{feed_forward.1} parent=0 // pred_region
    %v292 = vld [vmem:[#allocation2] sm:$0xff]
    %v293 = vld [vmem:[#allocation2 + $0x8] sm:$0xff]
    %v294 = vld [vmem:[%s4] sm:$0x1]
    %v296 = vperm.slane %v294, 0
    %v298 = vadd.f32 %v292, %v296
    %v299 = vadd.f32 %v293, %v296
    %300 = vst [vmem:[%s5] sm:$0xff] %v298
    %301 = vst [vmem:[%s5 + $0x8] sm:$0xff] %v299
  $region29: #{feed_forward.1} parent=0 // pred_fallthru
    _
  // Predicated region
  $region30: #{feed_forward.1} parent=0 // pred_check
    _
  $region31: #{feed_forward.1} parent=0 // pred_check_branch
    %303 = sbr.rel (0) target = $region33
  $region32: #{feed_forward.1} parent=0 // pred_region
    _
  $region33: #{feed_forward.1} parent=0 // pred_fallthru
    _
  // Predicated region
  $region34: #{feed_forward.1} parent=0 // pred_check
    _
  $region35: #{feed_forward.1} parent=0 // pred_check_branch
    %305 = sbr.rel (0) target = $region37
  $region36: #{feed_forward.1} parent=0 // pred_region
    _
  $region37: #{feed_forward.1} parent=0 // pred_fallthru
    _

</llo_original>
